<compile_context>
chip_gen: v5e
topology: v5e:2x2
jax: 0.10.0
libtpu: 0.0.40
codegen_flags: <defaults>
</compile_context>

<pallas_src>
import functools

import numpy as np
import jax
import jax.numpy as jnp
from jax.experimental import pallas as pl
from jax.experimental.pallas import tpu as pltpu

GROWTH = 32
BLOCK_CONFIG = (6, 12, 48, 32)   # DenseNet-201
NUM_INIT = 64
BN_SIZE = 4
BN_EPS = 1e-5
L2N_EPS = 1e-6

L2N_ROW_TILE = 256
VMEM_LIMIT = 32 * 1024 * 1024    # fits v5e/v6e/v7x scoped VMEM


def _round_up(x, m):
    return -(-x // m) * m


# ----------------------------- Pallas kernels ------------------------------

def _fused_matmul_kernel(*refs, pre, post):
    """out = [relu(acc*s_out+b_out)] with acc = [relu(x*s_in+b_in)] @ w (full K)."""
    i = 0
    x_ref = refs[i]; i += 1
    if pre:
        si_ref, bi_ref = refs[i], refs[i + 1]; i += 2
    w_ref = refs[i]; i += 1
    if post:
        so_ref, bo_ref = refs[i], refs[i + 1]; i += 2
    o_ref = refs[i]

    if pre:
        h = x_ref[...].astype(jnp.float32) * si_ref[...] + bi_ref[...]
        h = jnp.maximum(h, 0.0).astype(jnp.bfloat16)
    else:
        h = x_ref[...]
    y = jnp.dot(h, w_ref[...], preferred_element_type=jnp.float32)
    if post:
        y = jnp.maximum(y * so_ref[...] + bo_ref[...], 0.0)
    o_ref[...] = y.astype(o_ref.dtype)


def fused_matmul(x, w, *, s_in=None, b_in=None, s_out=None, b_out=None,
                 out_dtype=jnp.bfloat16):
    """Optional BN+ReLU -> matmul (bf16 MXU, f32 acc) -> optional BN+ReLU epilogue.

    Single full-K block: only the first w.shape[0] columns of `x` are read (the
    live channels of the dense-block accumulator), the weight / scales are DMA'd
    once and stay resident across all row tiles.
    """
    M = x.shape[0]
    K, N = w.shape
    pre = s_in is not None
    post = s_out is not None

    cap = 1024 if K <= 512 else 512          # VMEM-safe row tile (f32 temporaries)
    TM = M if M <= cap else cap

    in_specs = [pl.BlockSpec((TM, K), lambda i: (i, 0))]
    args = [x]
    if pre:
        in_specs += [pl.BlockSpec((1, K), lambda i: (0, 0)),
                     pl.BlockSpec((1, K), lambda i: (0, 0))]
        args += [s_in.reshape(1, K), b_in.reshape(1, K)]
    in_specs += [pl.BlockSpec((K, N), lambda i: (0, 0))]
    args += [w]
    if post:
        in_specs += [pl.BlockSpec((1, N), lambda i: (0, 0)),
                     pl.BlockSpec((1, N), lambda i: (0, 0))]
        args += [s_out.reshape(1, N), b_out.reshape(1, N)]

    return pl.pallas_call(
        functools.partial(_fused_matmul_kernel, pre=pre, post=post),
        grid=(pl.cdiv(M, TM),),
        in_specs=in_specs,
        out_specs=pl.BlockSpec((TM, N), lambda i: (i, 0)),
        out_shape=jax.ShapeDtypeStruct((M, N), out_dtype),
        compiler_params=pltpu.CompilerParams(
            dimension_semantics=("parallel",),
            vmem_limit_bytes=VMEM_LIMIT),
    )(*args)


def _conv3x3_kernel(x_ref, w_ref, o_ref, *, W, Wp8, HT):
    """Direct 3x3/s1 conv on one row tile of a padded, width-flattened image.

    x_ref: (1, (H+2)*Wp8, C)  zero padded; Wp8 = round_up(W+2, 8), rows flattened.
    w_ref: (3, C, 3*Cout)     per-dy weights with the 3 dx taps lane-concatenated.
    o_ref: (1, HT, W, Cout)   one HT-row tile of one image.
    """
    t = pl.program_id(1)
    Cout = o_ref.shape[-1]
    R = HT * Wp8
    start = pl.multiple_of(t * R, 8)

    acc = None
    for dy in range(3):
        xd = x_ref[0, pl.ds(start + dy * Wp8, R), :]          # (R, C), no relayout
        d = jnp.dot(xd, w_ref[dy], preferred_element_type=jnp.float32)
        acc = d if acc is None else acc + d                   # (R, 3*Cout) f32

    # Combine dx taps: out[r] = acc[r, 0:Co] + acc[r+1, Co:2Co] + acc[r+2, 2Co:3Co]
    # (roll wrap-around only lands in the padded columns w >= W, discarded below).
    y = (acc[:, :Cout]
         + pltpu.roll(acc[:, Cout:2 * Cout], R - 1, axis=0)
         + pltpu.roll(acc[:, 2 * Cout:], R - 2, axis=0))
    y = y.reshape(HT, Wp8, Cout)[:, :W, :]                    # drop padded columns
    o_ref[0] = y.astype(o_ref.dtype)


def conv3x3(x_flat, wcat, *, H, W, Wp8, out_dtype=jnp.bfloat16):
    # x_flat: (N, (H+2)*Wp8, C); wcat: (3, C, 3*Cout)
    N, R_full, C = x_flat.shape
    Cout = wcat.shape[-1] // 3
    HT = H // 2 if (H % 2 == 0 and H >= 16) else H            # row tiling (v7x)
    nt = H // HT
    return pl.pallas_call(
        functools.partial(_conv3x3_kernel, W=W, Wp8=Wp8, HT=HT),
        grid=(N, nt),
        in_specs=[pl.BlockSpec((1, R_full, C), lambda n, t: (n, 0, 0)),
                  pl.BlockSpec((3, C, 3 * Cout), lambda n, t: (0, 0, 0))],
        out_specs=pl.BlockSpec((1, HT, W, Cout), lambda n, t: (n, t, 0, 0)),
        out_shape=jax.ShapeDtypeStruct((N, H, W, Cout), out_dtype),
        compiler_params=pltpu.CompilerParams(
            dimension_semantics=("parallel", "parallel"),
            vmem_limit_bytes=VMEM_LIMIT),
    )(x_flat, wcat)


def _maxpool3x3s2_kernel(x_ref, o_ref):
    """3x3 stride-2 max pool on one zero-padded image (input >= 0 post-ReLU).

    x_ref: (1, Hp, Wq, 2C) with adjacent W pairs folded into lanes.
    o_ref: (1, Ho, Wo, C).
    """
    x = x_ref[0]
    Hp, Wq, C2 = x.shape
    C = C2 // 2
    Ho = Hp // 2 - 1
    Wo = Wq - 1
    e = x[:, :, :C]                              # padded columns 2k
    o = x[:, :, C:]                              # padded columns 2k+1
    # W direction: window (2k, 2k+1, 2k+2); roll wrap only pollutes k >= Wo.
    wmax = jnp.maximum(jnp.maximum(e, o), pltpu.roll(e, Wq - 1, axis=1))
    # H direction: window (2h, 2h+1, 2h+2) via leading-dim pairing.
    wr = wmax.reshape(Hp // 2, 2, Wq, C)
    re = wr[:, 0]
    hpair = jnp.maximum(re, wr[:, 1])
    out = jnp.maximum(hpair[:Ho], re[1:Ho + 1])
    o_ref[0] = out[:, :Wo, :]


def maxpool3x3s2(h_map):
    # h_map: (N, H, W, C), non-negative (post-ReLU), pad=1 stride=2 kernel=3.
    N, H, W, C = h_map.shape
    assert H % 2 == 0 and W % 2 == 0
    Hp, Wp = H + 2, W + 2
    Ho, Wo = H // 2, W // 2
    hp = jnp.pad(h_map, ((0, 0), (1, 1), (1, 1), (0, 0)))
    xq = hp.reshape(N, Hp, Wp // 2, 2 * C)
    out = pl.pallas_call(
        _maxpool3x3s2_kernel,
        grid=(N,),
        in_specs=[pl.BlockSpec((1, Hp, Wp // 2, 2 * C), lambda n: (n, 0, 0, 0))],
        out_specs=pl.BlockSpec((1, Ho, Wo, C), lambda n: (n, 0, 0, 0)),
        out_shape=jax.ShapeDtypeStruct((N, Ho, Wo, C), h_map.dtype),
        compiler_params=pltpu.CompilerParams(
            dimension_semantics=("parallel",),
            vmem_limit_bytes=VMEM_LIMIT),
    )(xq)
    return out.reshape(N * Ho * Wo, C)


def _avgpool2x2_kernel(x_ref, o_ref):
    # x_ref: (1, H, Wo, 2C) with adjacent W pairs folded into lanes.
    x = x_ref[0].astype(jnp.float32)
    H, Wo, C2 = x.shape
    C = C2 // 2
    xr = x.reshape(H // 2, 2, Wo, C2)              # leading-dim split only
    s = xr[:, 0] + xr[:, 1]                        # sum over the H pair
    o_ref[0] = ((s[..., :C] + s[..., C:]) * 0.25).astype(o_ref.dtype)


def avgpool2x2(h, N, H, W, C):
    assert H % 2 == 0 and W % 2 == 0
    x = h.reshape(N, H, W // 2, 2 * C)             # free row-major refold
    Ho, Wo = H // 2, W // 2
    out = pl.pallas_call(
        _avgpool2x2_kernel,
        grid=(N,),
        in_specs=[pl.BlockSpec((1, H, Wo, 2 * C), lambda n: (n, 0, 0, 0))],
        out_specs=pl.BlockSpec((1, Ho, Wo, C), lambda n: (n, 0, 0, 0)),
        out_shape=jax.ShapeDtypeStruct((N, Ho, Wo, C), h.dtype),
        compiler_params=pltpu.CompilerParams(
            dimension_semantics=("parallel",),
            vmem_limit_bytes=VMEM_LIMIT),
    )(x)
    return out.reshape(N * Ho * Wo, C)


def _bn_l2n_kernel(x_ref, s_ref, b_ref, o_ref, *, eps):
    h = x_ref[...].astype(jnp.float32) * s_ref[...] + b_ref[...]
    ssq = jnp.sum(h * h, axis=-1, keepdims=True)
    o_ref[...] = h * jax.lax.rsqrt(ssq + eps * eps)   # EUP rsqrt, no divide


def bn_l2n(x, scale, shift, eps=L2N_EPS):
    M, C = x.shape
    TM = M if M <= L2N_ROW_TILE else L2N_ROW_TILE
    return pl.pallas_call(
        functools.partial(_bn_l2n_kernel, eps=eps),
        grid=(pl.cdiv(M, TM),),
        in_specs=[pl.BlockSpec((TM, C), lambda i: (i, 0)),
                  pl.BlockSpec((1, C), lambda i: (0, 0)),
                  pl.BlockSpec((1, C), lambda i: (0, 0))],
        out_specs=pl.BlockSpec((TM, C), lambda i: (i, 0)),
        out_shape=jax.ShapeDtypeStruct((M, C), jnp.float32),
        compiler_params=pltpu.CompilerParams(
            dimension_semantics=("parallel",),
            vmem_limit_bytes=VMEM_LIMIT),
    )(x, scale.reshape(1, C), shift.reshape(1, C))


# ------------------------------ JAX glue ------------------------------------

def im2col(x_nhwc, kh, kw, stride, pad):
    """Zero-padded patch extraction -> (N*Ho*Wo, kh*kw*C); tap order (dy, dx, c)."""
    N, H, W, C = x_nhwc.shape
    xp = jnp.pad(x_nhwc, ((0, 0), (pad, pad), (pad, pad), (0, 0)))
    Ho = (H + 2 * pad - kh) // stride + 1
    Wo = (W + 2 * pad - kw) // stride + 1
    cols = [xp[:, dy:dy + stride * Ho:stride, dx:dx + stride * Wo:stride, :]
            for dy in range(kh) for dx in range(kw)]
    return jnp.concatenate(cols, axis=-1).reshape(N * Ho * Wo, kh * kw * C)


# -------------------------- jitted network stages ----------------------------

@jax.jit
def _stem(x_nchw, conv0_w, bn0_s, bn0_b):
    x = jnp.transpose(x_nchw, (0, 2, 3, 1)).astype(jnp.bfloat16)   # NCHW -> NHWC
    patches = im2col(x, 7, 7, 2, 3)
    # conv0 (7x7 s2, no bias) with folded norm0 + relu0 as the epilogue
    return fused_matmul(patches, conv0_w, s_out=bn0_s, b_out=bn0_b)


@jax.jit
def _pool0(h_map):
    # maxpool 3x3 s2 p1, fully in-kernel (no tap materialization in HBM).
    return maxpool3x3s2(h_map)


@functools.partial(jax.jit, donate_argnums=(0,), static_argnames=("N", "H", "W"))
def _dense_layer(acc, lp, cin, N, H, W):
    # norm1 + relu1 + conv1 (1x1) with norm2 + relu2 fused as output epilogue.
    bott = fused_matmul(acc, lp["w1"], s_in=lp["s1"], b_in=lp["b1"],
                        s_out=lp["s2"], b_out=lp["b2"])
    # conv2 (3x3 pad 1): spatial zero-padding AFTER norm2+relu2, as in PyTorch.
    # Width is padded up to a multiple of 8 so the conv kernel's row slices are
    # tile aligned; the extra zero columns never feed a valid output.
    Wp8 = _round_up(W + 2, 8)
    bmap = jnp.pad(bott.reshape(N, H, W, BN_SIZE * GROWTH),
                   ((0, 0), (1, 1), (1, 1 + Wp8 - (W + 2)), (0, 0)))
    x_flat = bmap.reshape(N, (H + 2) * Wp8, BN_SIZE * GROWTH)
    new = conv3x3(x_flat, lp["w2"], H=H, W=W, Wp8=Wp8)           # (N, H, W, 32)
    # dense concat: in-place update of the donated accumulator.
    return jax.lax.dynamic_update_slice_in_dim(
        acc, new.reshape(N * H * W, GROWTH), cin, axis=1)


@functools.partial(jax.jit, static_argnames=("N", "H", "W"))
def _transition(h, tp, N, H, W):
    h = fused_matmul(h, tp["w"], s_in=tp["s"], b_in=tp["b"])   # BN+ReLU+1x1
    return avgpool2x2(h, N, H, W, tp["w"].shape[1])            # avgpool 2x2 s2


@functools.partial(jax.jit, static_argnames=("N", "H", "W"))
def _final(h, bn5_s, bn5_b, N, H, W):
    y = bn_l2n(h, bn5_s, bn5_b)                                # norm5 (no ReLU) + L2N
    return jnp.transpose(y.reshape(N, H, W, y.shape[1]), (0, 3, 1, 2))


# ------------------------- deterministic parameters --------------------------

def _fold_bn(rng, c):
    gamma = 1.0 + 0.1 * rng.standard_normal(c)
    beta = 0.1 * rng.standard_normal(c)
    mean = 0.1 * rng.standard_normal(c)
    var = 1.0 + 0.1 * rng.random(c)
    scale = (gamma / np.sqrt(var + BN_EPS)).astype(np.float32)
    shift = (beta - mean * scale).astype(np.float32)
    return scale, shift


def _conv_w(rng, kh, kw, cin, cout):
    std = np.sqrt(2.0 / (kh * kw * cin))
    return (std * rng.standard_normal((kh, kw, cin, cout))).astype(np.float32)


def build_params(seed=0):
    rng = np.random.default_rng(seed)
    conv0 = _conv_w(rng, 7, 7, 3, NUM_INIT).reshape(7 * 7 * 3, NUM_INIT)
    s0, b0 = _fold_bn(rng, NUM_INIT)
    p = {"conv0": jnp.asarray(conv0, jnp.bfloat16),
         "bn0_s": jnp.asarray(s0), "bn0_b": jnp.asarray(b0)}
    blocks = []
    c = NUM_INIT
    for bi, nlayers in enumerate(BLOCK_CONFIG):
        layers = []
        for li in range(nlayers):
            cin = c + li * GROWTH
            cin_pad = _round_up(cin, 128)            # <= block width
            s1, b1 = _fold_bn(rng, cin)
            s1p = np.zeros(cin_pad, np.float32); s1p[:cin] = s1
            b1p = np.zeros(cin_pad, np.float32); b1p[:cin] = b1
            w1 = _conv_w(rng, 1, 1, cin, BN_SIZE * GROWTH)[0, 0]
            w1p = np.zeros((cin_pad, BN_SIZE * GROWTH), np.float32)
            w1p[:cin] = w1
            s2, b2 = _fold_bn(rng, BN_SIZE * GROWTH)
            w2 = _conv_w(rng, 3, 3, BN_SIZE * GROWTH, GROWTH)
            # lane-concatenate the 3 dx taps per dy: (3, 3, C, Co) -> (3, C, 3*Co)
            w2cat = w2.transpose(0, 2, 1, 3).reshape(3, BN_SIZE * GROWTH,
                                                     3 * GROWTH)
            layers.append(dict(
                s1=jnp.asarray(s1p), b1=jnp.asarray(b1p),
                w1=jnp.asarray(w1p, jnp.bfloat16),
                s2=jnp.asarray(s2), b2=jnp.asarray(b2),
                w2=jnp.asarray(w2cat, jnp.bfloat16)))
        blk = {"layers": layers}
        c = c + nlayers * GROWTH
        if bi != len(BLOCK_CONFIG) - 1:
            st, bt = _fold_bn(rng, c)
            wt = _conv_w(rng, 1, 1, c, c // 2)[0, 0]
            blk["trans"] = dict(s=jnp.asarray(st), b=jnp.asarray(bt),
                                w=jnp.asarray(wt, jnp.bfloat16))
            c //= 2
        blocks.append(blk)
    p["blocks"] = blocks
    s5, b5 = _fold_bn(rng, c)                        # c == 1920
    p["bn5_s"] = jnp.asarray(s5)
    p["bn5_b"] = jnp.asarray(b5)
    return p


# ------------------------------ forward pass --------------------------------

def densenet201_forward(params, x_nchw, feature_name="raw"):
    if feature_name in ("rmac", "ramac", "Grmac", "Mac", "SPoc"):
        # TODO(synk): Rmac/Ramac/Grmac/Mac/SPoc pooling heads are not defined in
        # the reference module; only the default (raw feature) path is implemented.
        raise NotImplementedError("pooling head definitions not provided")

    N, _, H, W = x_nchw.shape

    # stem: conv0 7x7 s2 p3  (+ folded norm0 + relu0)
    h = _stem(x_nchw, params["conv0"], params["bn0_s"], params["bn0_b"])
    H = (H + 6 - 7) // 2 + 1
    W = (W + 6 - 7) // 2 + 1
    C = NUM_INIT

    # pool0: maxpool 3x3 s2 p1
    h = _pool0(h.reshape(N, H, W, C))
    H = (H + 2 - 3) // 2 + 1
    W = (W + 2 - 3) // 2 + 1

    for block in params["blocks"]:
        layers = block["layers"]
        cmax = C + len(layers) * GROWTH
        acc = jnp.pad(h, ((0, 0), (0, cmax - C)))    # not-yet-produced channels = 0
        for li in range(len(layers)):
            acc = _dense_layer(acc, layers[li], C + li * GROWTH, N=N, H=H, W=W)
        h = acc
        C = cmax
        if "trans" in block:
            h = _transition(h, block["trans"], N=N, H=H, W=W)
            C //= 2
            H //= 2
            W //= 2

    # norm5 (no ReLU -- backbone = Sequential(features) only) + L2N over channels
    return _final(h, params["bn5_s"], params["bn5_b"], N=N, H=H, W=W)


# --------------------------------- main --------------------------------------

if __name__ == "__main__":
    key = jax.random.PRNGKey(0)
    x = jax.random.normal(key, (2, 3, 32, 32), jnp.float32)   # NCHW like PyTorch
    params = build_params(seed=0)

    feat = densenet201_forward(params, x)
    feat = jax.block_until_ready(feat)

    assert feat.shape == (2, 1920, 1, 1), feat.shape
    assert bool(jnp.all(jnp.isfinite(feat)))
    # L2N: per-(n,h,w) channel norm should be ~1
    ssq = jnp.sum(feat.astype(jnp.float32) ** 2, axis=1)
    assert bool(jnp.all(jnp.abs(ssq - 1.0) < 1e-2))
    print("KERNEL_OK")
</pallas_src>

<mosaic_0001>
module attributes {stable_mosaic.version = 11 : i64} {
  func.func @_fused_matmul_kernel(%arg0: i32, %arg1: memref<512x147xbf16, #tpu.memory_space<vmem>>, %arg2: memref<147x64xbf16, #tpu.memory_space<vmem>>, %arg3: memref<1x64xf32, #tpu.memory_space<vmem>>, %arg4: memref<1x64xf32, #tpu.memory_space<vmem>>, %arg5: memref<512x64xbf16, #tpu.memory_space<vmem>>) attributes {dimension_semantics = [#tpu.dimension_semantics<parallel>], iteration_bounds = array<i64: 1>, scalar_prefetch = 0 : i64, scratch_operands = 0 : i64, tpu.core_type = #tpu.core_type<tc>, window_params = [{transform_indices = @transform_0, window_bounds = array<i64: 512, 147>}, {pipeline_mode = #tpu.pipeline_mode<synchronous>, transform_indices = @transform_1, window_bounds = array<i64: 147, 64>}, {pipeline_mode = #tpu.pipeline_mode<synchronous>, transform_indices = @transform_2, window_bounds = array<i64: 1, 64>}, {pipeline_mode = #tpu.pipeline_mode<synchronous>, transform_indices = @transform_3, window_bounds = array<i64: 1, 64>}, {transform_indices = @transform_4, window_bounds = array<i64: 512, 64>}]} {
    %c0 = arith.constant 0 : index
    %c0_0 = arith.constant 0 : index
    %0 = vector.load %arg1[%c0, %c0_0] : memref<512x147xbf16, #tpu.memory_space<vmem>>, vector<512x147xbf16>
    %c0_1 = arith.constant 0 : index
    %c0_2 = arith.constant 0 : index
    %1 = vector.load %arg2[%c0_1, %c0_2] : memref<147x64xbf16, #tpu.memory_space<vmem>>, vector<147x64xbf16>
    %cst = arith.constant dense<0.000000e+00> : vector<512x64xf32>
    %2 = tpu.matmul %0, %1, %cst {dimension_numbers = #tpu.dot_dimension_numbers<[1], [0], [0], [1], [0, 0, 1, 1], [], []>} : vector<512x147xbf16>, vector<147x64xbf16>, vector<512x64xf32> -> vector<512x64xf32>
    %c0_3 = arith.constant 0 : index
    %c0_4 = arith.constant 0 : index
    %3 = vector.load %arg3[%c0_3, %c0_4] : memref<1x64xf32, #tpu.memory_space<vmem>>, vector<1x64xf32>
    %4 = vector.broadcast %3 : vector<1x64xf32> to vector<512x64xf32>
    %5 = arith.mulf %2, %4 : vector<512x64xf32>
    %c0_5 = arith.constant 0 : index
    %c0_6 = arith.constant 0 : index
    %6 = vector.load %arg4[%c0_5, %c0_6] : memref<1x64xf32, #tpu.memory_space<vmem>>, vector<1x64xf32>
    %7 = vector.broadcast %6 : vector<1x64xf32> to vector<512x64xf32>
    %8 = arith.addf %5, %7 : vector<512x64xf32>
    %cst_7 = arith.constant 0.000000e+00 : f32
    %9 = vector.broadcast %cst_7 : f32 to vector<512x64xf32>
    %10 = arith.maximumf %8, %9 : vector<512x64xf32>
    %11 = arith.truncf %10 : vector<512x64xf32> to vector<512x64xbf16>
    %c0_8 = arith.constant 0 : index
    %c0_9 = arith.constant 0 : index
    %12 = vector.load %arg5[%c0_8, %c0_9] : memref<512x64xbf16, #tpu.memory_space<vmem>>, vector<512x64xbf16>
    tpu.vector_store %arg5[%c0_8, %c0_9], %11 {strides = array<i32>} : memref<512x64xbf16, #tpu.memory_space<vmem>>, vector<512x64xbf16>,
    return
  }
  func.func @transform_0(%arg0: i32) -> (i32, i32) {
    %c0_i32 = arith.constant 0 : i32
    %c0_i32_0 = arith.constant 0 : i32
    return %arg0, %c0_i32 : i32, i32
  }
  func.func @transform_1(%arg0: i32) -> (i32, i32) {
    %c0_i32 = arith.constant 0 : i32
    %c0_i32_0 = arith.constant 0 : i32
    %c0_i32_1 = arith.constant 0 : i32
    return %c0_i32, %c0_i32_0 : i32, i32
  }
  func.func @transform_2(%arg0: i32) -> (i32, i32) {
    %c0_i32 = arith.constant 0 : i32
    %c0_i32_0 = arith.constant 0 : i32
    %c0_i32_1 = arith.constant 0 : i32
    return %c0_i32, %c0_i32_0 : i32, i32
  }
  func.func @transform_3(%arg0: i32) -> (i32, i32) {
    %c0_i32 = arith.constant 0 : i32
    %c0_i32_0 = arith.constant 0 : i32
    %c0_i32_1 = arith.constant 0 : i32
    return %c0_i32, %c0_i32_0 : i32, i32
  }
  func.func @transform_4(%arg0: i32) -> (i32, i32) {
    %c0_i32 = arith.constant 0 : i32
    %c0_i32_0 = arith.constant 0 : i32
    return %arg0, %c0_i32 : i32, i32
  }
}

</mosaic_0001>

<llo_original>
// kernel: _stem.1
$region0: #{_stem.1}
  #allocation0 [shape = 'u32[]', space=smem, size = 0x4, offset = 0x4, fixed_abs, tag = 'smem constant byte address 0x4 - core index']
  #allocation1 [shape = 'u32[72,128]{1,0:T(1,128)}', space=vmem, size = 0x9000, scoped, tag = 'internal scratch']
  %s0 = inlined_call_operand.vmem [shape: bf16[512,147], index: 0, kind: input, shape index: {}]
  %s1 = inlined_call_operand.vmem [shape: bf16[147,64], index: 1, kind: input, shape index: {}]
  %s2 = inlined_call_operand.vmem [shape: f32[1,64], index: 2, kind: input, shape index: {}]
  %s3 = inlined_call_operand.vmem [shape: f32[1,64], index: 3, kind: input, shape index: {}]
  %s4 = inlined_call_operand.vmem [shape: bf16[512,64], index: 4, kind: output, shape index: {}]
  %s5 = sld [smem:[#allocation0]]
  $region26: #{_stem.1} parent=0
    _
  %s7 = ssub.s32 1, %s5
  %s8 = scalar_select 0, %s7, %s5
  // Predicated region
  $region2: #{_stem.1} parent=0 // pred_check
    _
  $region3: #{_stem.1} parent=0 // pred_check_branch
    %10 = sbr.rel (0) target = $region5
  $region4: #{_stem.1} parent=0 // pred_region
    _
  $region5: #{_stem.1} parent=0 // pred_fallthru
    _
  // Predicated region
  $region6: #{_stem.1} parent=0 // pred_check
    _
  $region7: #{_stem.1} parent=0 // pred_check_branch
    %12 = sbr.rel (0) target = $region9
  $region8: #{_stem.1} parent=0 // pred_region
    _
  $region9: #{_stem.1} parent=0 // pred_fallthru
    _
  // Predicated region
  $region10: #{_stem.1} parent=0 // pred_check
    _
  $region11: #{_stem.1} parent=0 // pred_check_branch
    %14 = sbr.rel (0) target = $region13
  $region12: #{_stem.1} parent=0 // pred_region
    _
  $region13: #{_stem.1} parent=0 // pred_fallthru
    _
  // Predicated region
  $region14: #{_stem.1} parent=0 // pred_check
    _
  $region15: #{_stem.1} parent=0 // pred_check_branch
    %16 = sbr.rel (0) target = $region17
  $region16: #{_stem.1} parent=0 // pred_region
    _
  $region17: #{_stem.1} parent=0 // pred_fallthru
    _
  %v18 = vld [vmem:[%s0] sm:$0xff]
  %v19 = vld [vmem:[%s0 + $0x8] sm:$0xff]
  %v20 = vld [vmem:[%s0 + $0x10] sm:$0xff]
  %v21 = vld [vmem:[%s0 + $0x18] sm:$0xff]
  %v22 = vld [vmem:[%s0 + $0x20] sm:$0xff]
  %v23 = vld [vmem:[%s0 + $0x28] sm:$0xff]
  %v24 = vld [vmem:[%s0 + $0x30] sm:$0xff]
  %v25 = vld [vmem:[%s0 + $0x38] sm:$0xff]
  %v26 = vld [vmem:[%s0 + $0x40] sm:$0xff]
  %v27 = vld [vmem:[%s0 + $0x48] sm:$0xff]
  %v28 = vld [vmem:[%s0 + $0x50] sm:$0xff]
  %v29 = vld [vmem:[%s0 + $0x58] sm:$0xff]
  %v30 = vld [vmem:[%s0 + $0x60] sm:$0xff]
  %v31 = vld [vmem:[%s0 + $0x68] sm:$0xff]
  %v32 = vld [vmem:[%s0 + $0x70] sm:$0xff]
  %v33 = vld [vmem:[%s0 + $0x78] sm:$0xff]
  %v34 = vld [vmem:[%s0 + $0x80] sm:$0xff]
  %v35 = vld [vmem:[%s0 + $0x88] sm:$0xff]
  %v36 = vld [vmem:[%s0 + $0x90] sm:$0xff]
  %v37 = vld [vmem:[%s0 + $0x98] sm:$0xff]
  %v38 = vld [vmem:[%s0 + $0xa0] sm:$0xff]
  %v39 = vld [vmem:[%s0 + $0xa8] sm:$0xff]
  %v40 = vld [vmem:[%s0 + $0xb0] sm:$0xff]
  %v41 = vld [vmem:[%s0 + $0xb8] sm:$0xff]
  %v42 = vld [vmem:[%s0 + $0xc0] sm:$0xff]
  %v43 = vld [vmem:[%s0 + $0xc8] sm:$0xff]
  %v44 = vld [vmem:[%s0 + $0xd0] sm:$0xff]
  %v45 = vld [vmem:[%s0 + $0xd8] sm:$0xff]
  %v46 = vld [vmem:[%s0 + $0xe0] sm:$0xff]
  %v47 = vld [vmem:[%s0 + $0xe8] sm:$0xff]
  %v48 = vld [vmem:[%s0 + $0xf0] sm:$0xff]
  %v49 = vld [vmem:[%s0 + $0xf8] sm:$0xff]
  %v50 = vld [vmem:[%s0 + $0x100] sm:$0xff]
  %v51 = vld [vmem:[%s0 + $0x108] sm:$0xff]
  %v52 = vld [vmem:[%s0 + $0x110] sm:$0xff]
  %v53 = vld [vmem:[%s0 + $0x118] sm:$0xff]
  %v54 = vld [vmem:[%s0 + $0x120] sm:$0xff]
  %v55 = vld [vmem:[%s0 + $0x128] sm:$0xff]
  %v56 = vld [vmem:[%s0 + $0x130] sm:$0xff]
  %v57 = vld [vmem:[%s0 + $0x138] sm:$0xff]
  %v58 = vld [vmem:[%s0 + $0x140] sm:$0xff]
  %v59 = vld [vmem:[%s0 + $0x148] sm:$0xff]
  %v60 = vld [vmem:[%s0 + $0x150] sm:$0xff]
  %v61 = vld [vmem:[%s0 + $0x158] sm:$0xff]
  %v62 = vld [vmem:[%s0 + $0x160] sm:$0xff]
  %v63 = vld [vmem:[%s0 + $0x168] sm:$0xff]
  %v64 = vld [vmem:[%s0 + $0x170] sm:$0xff]
  %v65 = vld [vmem:[%s0 + $0x178] sm:$0xff]
  %v66 = vld [vmem:[%s0 + $0x180] sm:$0xff]
  %v67 = vld [vmem:[%s0 + $0x188] sm:$0xff]
  %v68 = vld [vmem:[%s0 + $0x190] sm:$0xff]
  %v69 = vld [vmem:[%s0 + $0x198] sm:$0xff]
  %v70 = vld [vmem:[%s0 + $0x1a0] sm:$0xff]
  %v71 = vld [vmem:[%s0 + $0x1a8] sm:$0xff]
  %v72 = vld [vmem:[%s0 + $0x1b0] sm:$0xff]
  %v73 = vld [vmem:[%s0 + $0x1b8] sm:$0xff]
  %v74 = vld [vmem:[%s0 + $0x1c0] sm:$0xff]
  %v75 = vld [vmem:[%s0 + $0x1c8] sm:$0xff]
  %v76 = vld [vmem:[%s0 + $0x1d0] sm:$0xff]
  %v77 = vld [vmem:[%s0 + $0x1d8] sm:$0xff]
  %v78 = vld [vmem:[%s0 + $0x1e0] sm:$0xff]
  %v79 = vld [vmem:[%s0 + $0x1e8] sm:$0xff]
  %v80 = vld [vmem:[%s0 + $0x1f0] sm:$0xff]
  %v81 = vld [vmem:[%s0 + $0x1f8] sm:$0xff]
  %v82 = vld [vmem:[%s1] sm:$0xf]
  %v83 = vld [vmem:[%s1 + $0x4] sm:$0xf]
  %v84 = vld [vmem:[%s1 + $0x8] sm:$0xf]
  %v85 = vld [vmem:[%s1 + $0xc] sm:$0xf]
  %v86 = vld [vmem:[%s1 + $0x10] sm:$0xf]
  %v87 = vld [vmem:[%s1 + $0x14] sm:$0xf]
  %v88 = vld [vmem:[%s1 + $0x18] sm:$0xf]
  %v89 = vld [vmem:[%s1 + $0x1c] sm:$0xf]
  %v90 = vld [vmem:[%s1 + $0x20] sm:$0xf]
  %v91 = vld [vmem:[%s1 + $0x24] sm:$0xf]
  %v92 = vld [vmem:[%s1 + $0x28] sm:$0xf]
  %v93 = vld [vmem:[%s1 + $0x2c] sm:$0xf]
  %v94 = vld [vmem:[%s1 + $0x30] sm:$0xf]
  %v95 = vld [vmem:[%s1 + $0x34] sm:$0xf]
  %v96 = vld [vmem:[%s1 + $0x38] sm:$0xf]
  %v97 = vld [vmem:[%s1 + $0x3c] sm:$0xf]
  %v98 = vld [vmem:[%s1 + $0x40] sm:$0xf]
  %v99 = vld [vmem:[%s1 + $0x44] sm:$0xf]
  %v100 = vld [vmem:[%s1 + $0x48] sm:$0x3]
  %v165 = vunpack.c.l.b16 %v18
  %v166 = vunpack.c.h.b16 %v18
  %v167 = vunpack.c.l.b16 %v19
  %v168 = vunpack.c.h.b16 %v19
  %v169 = vunpack.c.l.b16 %v20
  %v170 = vunpack.c.h.b16 %v20
  %v171 = vunpack.c.l.b16 %v21
  %v172 = vunpack.c.h.b16 %v21
  %v173 = vunpack.c.l.b16 %v22
  %v174 = vunpack.c.h.b16 %v22
  %v175 = vunpack.c.l.b16 %v23
  %v176 = vunpack.c.h.b16 %v23
  %v177 = vunpack.c.l.b16 %v24
  %v178 = vunpack.c.h.b16 %v24
  %v179 = vunpack.c.l.b16 %v25
  %v180 = vunpack.c.h.b16 %v25
  %v181 = vunpack.c.l.b16 %v26
  %v182 = vunpack.c.h.b16 %v26
  %v183 = vunpack.c.l.b16 %v27
  %v184 = vunpack.c.h.b16 %v27
  %v185 = vunpack.c.l.b16 %v28
  %v186 = vunpack.c.h.b16 %v28
  %v187 = vunpack.c.l.b16 %v29
  %v188 = vunpack.c.h.b16 %v29
  %v189 = vunpack.c.l.b16 %v30
  %v190 = vunpack.c.h.b16 %v30
  %v191 = vunpack.c.l.b16 %v31
  %v192 = vunpack.c.h.b16 %v31
  %v193 = vunpack.c.l.b16 %v32
  %v194 = vunpack.c.h.b16 %v32
  %v195 = vunpack.c.l.b16 %v33
  %v196 = vunpack.c.h.b16 %v33
  %v197 = vunpack.c.l.b16 %v34
  %v198 = vunpack.c.h.b16 %v34
  %v199 = vunpack.c.l.b16 %v35
  %v200 = vunpack.c.h.b16 %v35
  %v201 = vunpack.c.l.b16 %v36
  %v202 = vunpack.c.h.b16 %v36
  %v203 = vunpack.c.l.b16 %v37
  %v204 = vunpack.c.h.b16 %v37
  %v205 = vunpack.c.l.b16 %v38
  %v206 = vunpack.c.h.b16 %v38
  %v207 = vunpack.c.l.b16 %v39
  %v208 = vunpack.c.h.b16 %v39
  %v209 = vunpack.c.l.b16 %v40
  %v210 = vunpack.c.h.b16 %v40
  %v211 = vunpack.c.l.b16 %v41
  %v212 = vunpack.c.h.b16 %v41
  %v213 = vunpack.c.l.b16 %v42
  %v214 = vunpack.c.h.b16 %v42
  %v215 = vunpack.c.l.b16 %v43
  %v216 = vunpack.c.h.b16 %v43
  %v217 = vunpack.c.l.b16 %v44
  %v218 = vunpack.c.h.b16 %v44
  %v219 = vunpack.c.l.b16 %v45
  %v220 = vunpack.c.h.b16 %v45
  %v221 = vunpack.c.l.b16 %v46
  %v222 = vunpack.c.h.b16 %v46
  %v223 = vunpack.c.l.b16 %v47
  %v224 = vunpack.c.h.b16 %v47
  %v225 = vunpack.c.l.b16 %v48
  %v226 = vunpack.c.h.b16 %v48
  %v227 = vunpack.c.l.b16 %v49
  %v228 = vunpack.c.h.b16 %v49
  %v229 = vunpack.c.l.b16 %v50
  %v230 = vunpack.c.h.b16 %v50
  %v231 = vunpack.c.l.b16 %v51
  %v232 = vunpack.c.h.b16 %v51
  %v233 = vunpack.c.l.b16 %v52
  %v234 = vunpack.c.h.b16 %v52
  %v235 = vunpack.c.l.b16 %v53
  %v236 = vunpack.c.h.b16 %v53
  %v237 = vunpack.c.l.b16 %v54
  %v238 = vunpack.c.h.b16 %v54
  %v239 = vunpack.c.l.b16 %v55
  %v240 = vunpack.c.h.b16 %v55
  %v241 = vunpack.c.l.b16 %v56
  %v242 = vunpack.c.h.b16 %v56
  %v243 = vunpack.c.l.b16 %v57
  %v244 = vunpack.c.h.b16 %v57
  %v245 = vunpack.c.l.b16 %v58
  %v246 = vunpack.c.h.b16 %v58
  %v247 = vunpack.c.l.b16 %v59
  %v248 = vunpack.c.h.b16 %v59
  %v249 = vunpack.c.l.b16 %v60
  %v250 = vunpack.c.h.b16 %v60
  %v251 = vunpack.c.l.b16 %v61
  %v252 = vunpack.c.h.b16 %v61
  %v253 = vunpack.c.l.b16 %v62
  %v254 = vunpack.c.h.b16 %v62
  %v255 = vunpack.c.l.b16 %v63
  %v256 = vunpack.c.h.b16 %v63
  %v257 = vunpack.c.l.b16 %v64
  %v258 = vunpack.c.h.b16 %v64
  %v259 = vunpack.c.l.b16 %v65
  %v260 = vunpack.c.h.b16 %v65
  %v261 = vunpack.c.l.b16 %v66
  %v262 = vunpack.c.h.b16 %v66
  %v263 = vunpack.c.l.b16 %v67
  %v264 = vunpack.c.h.b16 %v67
  %v265 = vunpack.c.l.b16 %v68
  %v266 = vunpack.c.h.b16 %v68
  %v267 = vunpack.c.l.b16 %v69
  %v268 = vunpack.c.h.b16 %v69
  %v269 = vunpack.c.l.b16 %v70
  %v270 = vunpack.c.h.b16 %v70
  %v271 = vunpack.c.l.b16 %v71
  %v272 = vunpack.c.h.b16 %v71
  %v273 = vunpack.c.l.b16 %v72
  %v274 = vunpack.c.h.b16 %v72
  %v275 = vunpack.c.l.b16 %v73
  %v276 = vunpack.c.h.b16 %v73
  %v277 = vunpack.c.l.b16 %v74
  %v278 = vunpack.c.h.b16 %v74
  %v279 = vunpack.c.l.b16 %v75
  %v280 = vunpack.c.h.b16 %v75
  %v281 = vunpack.c.l.b16 %v76
  %v282 = vunpack.c.h.b16 %v76
  %v283 = vunpack.c.l.b16 %v77
  %v284 = vunpack.c.h.b16 %v77
  %v285 = vunpack.c.l.b16 %v78
  %v286 = vunpack.c.h.b16 %v78
  %v287 = vunpack.c.l.b16 %v79
  %v288 = vunpack.c.h.b16 %v79
  %v289 = vunpack.c.l.b16 %v80
  %v290 = vunpack.c.h.b16 %v80
  %v291 = vunpack.c.l.b16 %v81
  %v292 = vunpack.c.h.b16 %v81
  %v293 = vpack.c.b16 %v167, %v165
  %v294 = vpack.c.b16 %v168, %v166
  %v295 = vpack.c.b16 %v171, %v169
  %v296 = vpack.c.b16 %v172, %v170
  %v297 = vpack.c.b16 %v175, %v173
  %v298 = vpack.c.b16 %v176, %v174
  %v299 = vpack.c.b16 %v179, %v177
  %v300 = vpack.c.b16 %v180, %v178
  %v301 = vpack.c.b16 %v183, %v181
  %v302 = vpack.c.b16 %v184, %v182
  %v303 = vpack.c.b16 %v187, %v185
  %v304 = vpack.c.b16 %v188, %v186
  %v305 = vpack.c.b16 %v191, %v189
  %v306 = vpack.c.b16 %v192, %v190
  %v307 = vpack.c.b16 %v195, %v193
  %v308 = vpack.c.b16 %v196, %v194
  %v309 = vpack.c.b16 %v199, %v197
  %v310 = vpack.c.b16 %v200, %v198
  %v311 = vpack.c.b16 %v203, %v201
  %v312 = vpack.c.b16 %v204, %v202
  %v313 = vpack.c.b16 %v207, %v205
  %v314 = vpack.c.b16 %v208, %v206
  %v315 = vpack.c.b16 %v211, %v209
  %v316 = vpack.c.b16 %v212, %v210
  %v317 = vpack.c.b16 %v215, %v213
  %v318 = vpack.c.b16 %v216, %v214
  %v319 = vpack.c.b16 %v219, %v217
  %v320 = vpack.c.b16 %v220, %v218
  %v321 = vpack.c.b16 %v223, %v221
  %v322 = vpack.c.b16 %v224, %v222
  %v323 = vpack.c.b16 %v227, %v225
  %v324 = vpack.c.b16 %v228, %v226
  %v325 = vpack.c.b16 %v231, %v229
  %v326 = vpack.c.b16 %v232, %v230
  %v327 = vpack.c.b16 %v235, %v233
  %v328 = vpack.c.b16 %v236, %v234
  %v329 = vpack.c.b16 %v239, %v237
  %v330 = vpack.c.b16 %v240, %v238
  %v331 = vpack.c.b16 %v243, %v241
  %v332 = vpack.c.b16 %v244, %v242
  %v333 = vpack.c.b16 %v247, %v245
  %v334 = vpack.c.b16 %v248, %v246
  %v335 = vpack.c.b16 %v251, %v249
  %v336 = vpack.c.b16 %v252, %v250
  %v337 = vpack.c.b16 %v255, %v253
  %v338 = vpack.c.b16 %v256, %v254
  %v339 = vpack.c.b16 %v259, %v257
  %v340 = vpack.c.b16 %v260, %v258
  %v341 = vpack.c.b16 %v263, %v261
  %v342 = vpack.c.b16 %v264, %v262
  %v343 = vpack.c.b16 %v267, %v265
  %v344 = vpack.c.b16 %v268, %v266
  %v345 = vpack.c.b16 %v271, %v269
  %v346 = vpack.c.b16 %v272, %v270
  %v347 = vpack.c.b16 %v275, %v273
  %v348 = vpack.c.b16 %v276, %v274
  %v349 = vpack.c.b16 %v279, %v277
  %v350 = vpack.c.b16 %v280, %v278
  %v351 = vpack.c.b16 %v283, %v281
  %v352 = vpack.c.b16 %v284, %v282
  %v353 = vpack.c.b16 %v287, %v285
  %v354 = vpack.c.b16 %v288, %v286
  %v355 = vpack.c.b16 %v291, %v289
  %v356 = vpack.c.b16 %v292, %v290
  %v408 = vunpack.c.l.b16 %v82
  %v409 = vunpack.c.l.b16 %v83
  %v410 = vunpack.c.l.b16 %v84
  %v411 = vunpack.c.l.b16 %v85
  %v412 = vunpack.c.l.b16 %v86
  %v413 = vunpack.c.l.b16 %v87
  %v414 = vunpack.c.l.b16 %v88
  %v415 = vunpack.c.l.b16 %v89
  %v416 = vunpack.c.l.b16 %v90
  %v417 = vunpack.c.l.b16 %v91
  %v418 = vunpack.c.l.b16 %v92
  %v419 = vunpack.c.l.b16 %v93
  %v420 = vunpack.c.l.b16 %v94
  %v421 = vunpack.c.l.b16 %v95
  %v422 = vunpack.c.l.b16 %v96
  %v423 = vunpack.c.l.b16 %v97
  %v424 = vunpack.c.l.b16 %v98
  %v425 = vunpack.c.l.b16 %v99
  %v426 = vunpack.c.l.b16 %v100
  %v427 = vpack.c.b16 %v409, %v408
  %v428 = vpack.c.b16 %v411, %v410
  %v429 = vpack.c.b16 %v413, %v412
  %v430 = vpack.c.b16 %v415, %v414
  %v431 = vpack.c.b16 %v417, %v416
  %v432 = vpack.c.b16 %v419, %v418
  %v433 = vpack.c.b16 %v421, %v420
  %v434 = vpack.c.b16 %v423, %v422
  %v435 = vpack.c.b16 %v425, %v424
  %v436 = vpack.c.b16 %v426, %v426
  %vm446 = vcmask 154624
  %v448 = vsel %vm446, %v294, 0
  %v451 = vsel %vm446, %v296, 0
  %v454 = vsel %vm446, %v298, 0
  %v457 = vsel %vm446, %v300, 0
  %v460 = vsel %vm446, %v302, 0
  %v463 = vsel %vm446, %v304, 0
  %v466 = vsel %vm446, %v306, 0
  %v469 = vsel %vm446, %v308, 0
  %v472 = vsel %vm446, %v310, 0
  %v475 = vsel %vm446, %v312, 0
  %v478 = vsel %vm446, %v314, 0
  %v481 = vsel %vm446, %v316, 0
  %v484 = vsel %vm446, %v318, 0
  %v487 = vsel %vm446, %v320, 0
  %v490 = vsel %vm446, %v322, 0
  %v493 = vsel %vm446, %v324, 0
  %v496 = vsel %vm446, %v326, 0
  %v499 = vsel %vm446, %v328, 0
  %v502 = vsel %vm446, %v330, 0
  %v505 = vsel %vm446, %v332, 0
  %v508 = vsel %vm446, %v334, 0
  %v511 = vsel %vm446, %v336, 0
  %v514 = vsel %vm446, %v338, 0
  %v517 = vsel %vm446, %v340, 0
  %v520 = vsel %vm446, %v342, 0
  %v523 = vsel %vm446, %v344, 0
  %v526 = vsel %vm446, %v346, 0
  %v529 = vsel %vm446, %v348, 0
  %v532 = vsel %vm446, %v350, 0
  %v535 = vsel %vm446, %v352, 0
  %v538 = vsel %vm446, %v354, 0
  %v541 = vsel %vm446, %v356, 0
  %vm543 = vcmask 1040384
  %vm544 = vcmask 1041408
  %v545 = vsel %vm543, 4294967295, 65535
  %v546 = vsel %vm544, %v545, 0
  %v548 = vand.u32 %v436, %v546
  %550 = vmatpush.bf16.msra.mxu0 %v434
  %551 = vmatpush.bf16.msra.mxu0 %v433
  %552 = vmatpush.bf16.msra.mxu0 %v432
  %553 = vmatpush.bf16.msra.mxu0 %v431
  %554 = vmatpush.bf16.msra.mxu0 %v430
  %555 = vmatpush.bf16.msra.mxu0 %v429
  %556 = vmatpush.bf16.msra.mxu0 %v428
  %557 = vmatpush.bf16.msra.mxu0 %v427
  %558 = vmatmul.bf16.gmra.mxu0 %v293
  %v559 = vpop.f32.mrf.mxu0
  %v560 = vadd.f32 0.0, %v559
  %v561 = vpop.f32.mrf.mxu0
  %v562 = vadd.f32 0.0, %v561
  %563 = vmatmul.bf16.gmra.mxu0 %v295
  %v564 = vpop.f32.mrf.mxu0
  %v565 = vadd.f32 0.0, %v564
  %v566 = vpop.f32.mrf.mxu0
  %v567 = vadd.f32 0.0, %v566
  %568 = vmatmul.bf16.gmra.mxu0 %v297
  %v569 = vpop.f32.mrf.mxu0
  %v570 = vadd.f32 0.0, %v569
  %v571 = vpop.f32.mrf.mxu0
  %v572 = vadd.f32 0.0, %v571
  %573 = vmatmul.bf16.gmra.mxu0 %v299
  %v574 = vpop.f32.mrf.mxu0
  %v575 = vadd.f32 0.0, %v574
  %v576 = vpop.f32.mrf.mxu0
  %v577 = vadd.f32 0.0, %v576
  %578 = vmatmul.bf16.gmra.mxu0 %v301
  %v579 = vpop.f32.mrf.mxu0
  %v580 = vadd.f32 0.0, %v579
  %v581 = vpop.f32.mrf.mxu0
  %v582 = vadd.f32 0.0, %v581
  %583 = vmatmul.bf16.gmra.mxu0 %v303
  %v584 = vpop.f32.mrf.mxu0
  %v585 = vadd.f32 0.0, %v584
  %v586 = vpop.f32.mrf.mxu0
  %v587 = vadd.f32 0.0, %v586
  %588 = vmatmul.bf16.gmra.mxu0 %v305
  %v589 = vpop.f32.mrf.mxu0
  %v590 = vadd.f32 0.0, %v589
  %v591 = vpop.f32.mrf.mxu0
  %v592 = vadd.f32 0.0, %v591
  %593 = vmatmul.bf16.gmra.mxu0 %v307
  %v594 = vpop.f32.mrf.mxu0
  %v595 = vadd.f32 0.0, %v594
  %v596 = vpop.f32.mrf.mxu0
  %v597 = vadd.f32 0.0, %v596
  %598 = vmatmul.bf16.gmra.mxu0 %v309
  %v599 = vpop.f32.mrf.mxu0
  %v600 = vadd.f32 0.0, %v599
  %v601 = vpop.f32.mrf.mxu0
  %v602 = vadd.f32 0.0, %v601
  %603 = vmatmul.bf16.gmra.mxu0 %v311
  %v604 = vpop.f32.mrf.mxu0
  %v605 = vadd.f32 0.0, %v604
  %v606 = vpop.f32.mrf.mxu0
  %v607 = vadd.f32 0.0, %v606
  %608 = vmatmul.bf16.gmra.mxu0 %v313
  %v609 = vpop.f32.mrf.mxu0
  %v610 = vadd.f32 0.0, %v609
  %v611 = vpop.f32.mrf.mxu0
  %v612 = vadd.f32 0.0, %v611
  %613 = vmatmul.bf16.gmra.mxu0 %v315
  %v614 = vpop.f32.mrf.mxu0
  %v615 = vadd.f32 0.0, %v614
  %v616 = vpop.f32.mrf.mxu0
  %v617 = vadd.f32 0.0, %v616
  %618 = vmatmul.bf16.gmra.mxu0 %v317
  %v619 = vpop.f32.mrf.mxu0
  %v620 = vadd.f32 0.0, %v619
  %v621 = vpop.f32.mrf.mxu0
  %v622 = vadd.f32 0.0, %v621
  %623 = vmatmul.bf16.gmra.mxu0 %v319
  %v624 = vpop.f32.mrf.mxu0
  %v625 = vadd.f32 0.0, %v624
  %v626 = vpop.f32.mrf.mxu0
  %v627 = vadd.f32 0.0, %v626
  %628 = vmatmul.bf16.gmra.mxu0 %v321
  %v629 = vpop.f32.mrf.mxu0
  %v630 = vadd.f32 0.0, %v629
  %v631 = vpop.f32.mrf.mxu0
  %v632 = vadd.f32 0.0, %v631
  %633 = vmatmul.bf16.gmra.mxu0 %v323
  %v634 = vpop.f32.mrf.mxu0
  %v635 = vadd.f32 0.0, %v634
  %v636 = vpop.f32.mrf.mxu0
  %v637 = vadd.f32 0.0, %v636
  %638 = vmatmul.bf16.gmra.mxu0 %v325
  %v639 = vpop.f32.mrf.mxu0
  %v640 = vadd.f32 0.0, %v639
  %v641 = vpop.f32.mrf.mxu0
  %v642 = vadd.f32 0.0, %v641
  %643 = vmatmul.bf16.gmra.mxu0 %v327
  %v644 = vpop.f32.mrf.mxu0
  %v645 = vadd.f32 0.0, %v644
  %v646 = vpop.f32.mrf.mxu0
  %v647 = vadd.f32 0.0, %v646
  %648 = vmatmul.bf16.gmra.mxu0 %v329
  %v649 = vpop.f32.mrf.mxu0
  %v650 = vadd.f32 0.0, %v649
  %v651 = vpop.f32.mrf.mxu0
  %v652 = vadd.f32 0.0, %v651
  %653 = vmatmul.bf16.gmra.mxu0 %v331
  %v654 = vpop.f32.mrf.mxu0
  %v655 = vadd.f32 0.0, %v654
  %v656 = vpop.f32.mrf.mxu0
  %v657 = vadd.f32 0.0, %v656
  %658 = vmatmul.bf16.gmra.mxu0 %v333
  %v659 = vpop.f32.mrf.mxu0
  %v660 = vadd.f32 0.0, %v659
  %v661 = vpop.f32.mrf.mxu0
  %v662 = vadd.f32 0.0, %v661
  %663 = vmatmul.bf16.gmra.mxu0 %v335
  %v664 = vpop.f32.mrf.mxu0
  %v665 = vadd.f32 0.0, %v664
  %v666 = vpop.f32.mrf.mxu0
  %v667 = vadd.f32 0.0, %v666
  %668 = vmatmul.bf16.gmra.mxu0 %v337
  %v669 = vpop.f32.mrf.mxu0
  %v670 = vadd.f32 0.0, %v669
  %v671 = vpop.f32.mrf.mxu0
  %v672 = vadd.f32 0.0, %v671
  %673 = vmatmul.bf16.gmra.mxu0 %v339
  %v674 = vpop.f32.mrf.mxu0
  %v675 = vadd.f32 0.0, %v674
  %v676 = vpop.f32.mrf.mxu0
  %v677 = vadd.f32 0.0, %v676
  %678 = vmatmul.bf16.gmra.mxu0 %v341
  %v679 = vpop.f32.mrf.mxu0
  %v680 = vadd.f32 0.0, %v679
  %v681 = vpop.f32.mrf.mxu0
  %v682 = vadd.f32 0.0, %v681
  %683 = vmatmul.bf16.gmra.mxu0 %v343
  %v684 = vpop.f32.mrf.mxu0
  %v685 = vadd.f32 0.0, %v684
  %v686 = vpop.f32.mrf.mxu0
  %v687 = vadd.f32 0.0, %v686
  %688 = vmatmul.bf16.gmra.mxu0 %v345
  %v689 = vpop.f32.mrf.mxu0
  %v690 = vadd.f32 0.0, %v689
  %v691 = vpop.f32.mrf.mxu0
  %v692 = vadd.f32 0.0, %v691
  %693 = vmatmul.bf16.gmra.mxu0 %v347
  %v694 = vpop.f32.mrf.mxu0
  %v695 = vadd.f32 0.0, %v694
  %v696 = vpop.f32.mrf.mxu0
  %v697 = vadd.f32 0.0, %v696
  %698 = vmatmul.bf16.gmra.mxu0 %v349
  %v699 = vpop.f32.mrf.mxu0
  %v700 = vadd.f32 0.0, %v699
  %v701 = vpop.f32.mrf.mxu0
  %v702 = vadd.f32 0.0, %v701
  %703 = vmatmul.bf16.gmra.mxu0 %v351
  %v704 = vpop.f32.mrf.mxu0
  %v705 = vadd.f32 0.0, %v704
  %v706 = vpop.f32.mrf.mxu0
  %v707 = vadd.f32 0.0, %v706
  %708 = vmatmul.bf16.gmra.mxu0 %v353
  %v709 = vpop.f32.mrf.mxu0
  %v710 = vadd.f32 0.0, %v709
  %v711 = vpop.f32.mrf.mxu0
  %v712 = vadd.f32 0.0, %v711
  %713 = vmatmul.bf16.gmra.mxu0 %v355
  %v714 = vpop.f32.mrf.mxu0
  %v715 = vadd.f32 0.0, %v714
  %v716 = vpop.f32.mrf.mxu0
  %v717 = vadd.f32 0.0, %v716
  %718 = vdwg.mxu0
  %719 = vmatpush.bf16.msra.mxu0 0
  %720 = vmatpush.bf16.msra.mxu0 0
  %721 = vmatpush.bf16.msra.mxu0 0
  %722 = vmatpush.bf16.msra.mxu0 0
  %723 = vmatpush.bf16.msra.mxu0 0
  %724 = vmatpush.bf16.msra.mxu0 0
  %725 = vmatpush.bf16.msra.mxu0 %v548
  %726 = vmatpush.bf16.msra.mxu0 %v435
  %727 = vmatmul.bf16.gmra.mxu0 %v448
  %v728 = vpop.f32.mrf.mxu0
  %v729 = vadd.f32 %v560, %v728
  %v730 = vpop.f32.mrf.mxu0
  %v731 = vadd.f32 %v562, %v730
  %732 = vmatmul.bf16.gmra.mxu0 %v451
  %v733 = vpop.f32.mrf.mxu0
  %v734 = vadd.f32 %v565, %v733
  %v735 = vpop.f32.mrf.mxu0
  %v736 = vadd.f32 %v567, %v735
  %737 = vmatmul.bf16.gmra.mxu0 %v454
  %v738 = vpop.f32.mrf.mxu0
  %v739 = vadd.f32 %v570, %v738
  %v740 = vpop.f32.mrf.mxu0
  %v741 = vadd.f32 %v572, %v740
  %742 = vmatmul.bf16.gmra.mxu0 %v457
  %v743 = vpop.f32.mrf.mxu0
  %v744 = vadd.f32 %v575, %v743
  %v745 = vpop.f32.mrf.mxu0
  %v746 = vadd.f32 %v577, %v745
  %747 = vmatmul.bf16.gmra.mxu0 %v460
  %v748 = vpop.f32.mrf.mxu0
  %v749 = vadd.f32 %v580, %v748
  %v750 = vpop.f32.mrf.mxu0
  %v751 = vadd.f32 %v582, %v750
  %752 = vmatmul.bf16.gmra.mxu0 %v463
  %v753 = vpop.f32.mrf.mxu0
  %v754 = vadd.f32 %v585, %v753
  %v755 = vpop.f32.mrf.mxu0
  %v756 = vadd.f32 %v587, %v755
  %757 = vmatmul.bf16.gmra.mxu0 %v466
  %v758 = vpop.f32.mrf.mxu0
  %v759 = vadd.f32 %v590, %v758
  %v760 = vpop.f32.mrf.mxu0
  %v761 = vadd.f32 %v592, %v760
  %762 = vmatmul.bf16.gmra.mxu0 %v469
  %v763 = vpop.f32.mrf.mxu0
  %v764 = vadd.f32 %v595, %v763
  %v765 = vpop.f32.mrf.mxu0
  %v766 = vadd.f32 %v597, %v765
  %767 = vmatmul.bf16.gmra.mxu0 %v472
  %v768 = vpop.f32.mrf.mxu0
  %v769 = vadd.f32 %v600, %v768
  %v770 = vpop.f32.mrf.mxu0
  %v771 = vadd.f32 %v602, %v770
  %772 = vmatmul.bf16.gmra.mxu0 %v475
  %v773 = vpop.f32.mrf.mxu0
  %v774 = vadd.f32 %v605, %v773
  %v775 = vpop.f32.mrf.mxu0
  %v776 = vadd.f32 %v607, %v775
  %777 = vmatmul.bf16.gmra.mxu0 %v478
  %v778 = vpop.f32.mrf.mxu0
  %v779 = vadd.f32 %v610, %v778
  %v780 = vpop.f32.mrf.mxu0
  %v781 = vadd.f32 %v612, %v780
  %782 = vmatmul.bf16.gmra.mxu0 %v481
  %v783 = vpop.f32.mrf.mxu0
  %v784 = vadd.f32 %v615, %v783
  %v785 = vpop.f32.mrf.mxu0
  %v786 = vadd.f32 %v617, %v785
  %787 = vmatmul.bf16.gmra.mxu0 %v484
  %v788 = vpop.f32.mrf.mxu0
  %v789 = vadd.f32 %v620, %v788
  %v790 = vpop.f32.mrf.mxu0
  %v791 = vadd.f32 %v622, %v790
  %792 = vmatmul.bf16.gmra.mxu0 %v487
  %v793 = vpop.f32.mrf.mxu0
  %v794 = vadd.f32 %v625, %v793
  %v795 = vpop.f32.mrf.mxu0
  %v796 = vadd.f32 %v627, %v795
  %797 = vmatmul.bf16.gmra.mxu0 %v490
  %v798 = vpop.f32.mrf.mxu0
  %v799 = vadd.f32 %v630, %v798
  %v800 = vpop.f32.mrf.mxu0
  %v801 = vadd.f32 %v632, %v800
  %802 = vmatmul.bf16.gmra.mxu0 %v493
  %v803 = vpop.f32.mrf.mxu0
  %v804 = vadd.f32 %v635, %v803
  %v805 = vpop.f32.mrf.mxu0
  %v806 = vadd.f32 %v637, %v805
  %807 = vmatmul.bf16.gmra.mxu0 %v496
  %v808 = vpop.f32.mrf.mxu0
  %v809 = vadd.f32 %v640, %v808
  %v810 = vpop.f32.mrf.mxu0
  %v811 = vadd.f32 %v642, %v810
  %812 = vmatmul.bf16.gmra.mxu0 %v499
  %v813 = vpop.f32.mrf.mxu0
  %v814 = vadd.f32 %v645, %v813
  %v815 = vpop.f32.mrf.mxu0
  %v816 = vadd.f32 %v647, %v815
  %817 = vmatmul.bf16.gmra.mxu0 %v502
  %v818 = vpop.f32.mrf.mxu0
  %v819 = vadd.f32 %v650, %v818
  %v820 = vpop.f32.mrf.mxu0
  %v821 = vadd.f32 %v652, %v820
  %822 = vmatmul.bf16.gmra.mxu0 %v505
  %v823 = vpop.f32.mrf.mxu0
  %v824 = vadd.f32 %v655, %v823
  %v825 = vpop.f32.mrf.mxu0
  %v826 = vadd.f32 %v657, %v825
  %827 = vmatmul.bf16.gmra.mxu0 %v508
  %v828 = vpop.f32.mrf.mxu0
  %v829 = vadd.f32 %v660, %v828
  %v830 = vpop.f32.mrf.mxu0
  %v831 = vadd.f32 %v662, %v830
  %832 = vmatmul.bf16.gmra.mxu0 %v511
  %v833 = vpop.f32.mrf.mxu0
  %v834 = vadd.f32 %v665, %v833
  %v835 = vpop.f32.mrf.mxu0
  %v836 = vadd.f32 %v667, %v835
  %837 = vmatmul.bf16.gmra.mxu0 %v514
  %v838 = vpop.f32.mrf.mxu0
  %v839 = vadd.f32 %v670, %v838
  %v840 = vpop.f32.mrf.mxu0
  %v841 = vadd.f32 %v672, %v840
  %842 = vmatmul.bf16.gmra.mxu0 %v517
  %v843 = vpop.f32.mrf.mxu0
  %v844 = vadd.f32 %v675, %v843
  %v845 = vpop.f32.mrf.mxu0
  %v846 = vadd.f32 %v677, %v845
  %847 = vmatmul.bf16.gmra.mxu0 %v520
  %v848 = vpop.f32.mrf.mxu0
  %v849 = vadd.f32 %v680, %v848
  %v850 = vpop.f32.mrf.mxu0
  %v851 = vadd.f32 %v682, %v850
  %852 = vmatmul.bf16.gmra.mxu0 %v523
  %v853 = vpop.f32.mrf.mxu0
  %v854 = vadd.f32 %v685, %v853
  %v855 = vpop.f32.mrf.mxu0
  %v856 = vadd.f32 %v687, %v855
  %857 = vmatmul.bf16.gmra.mxu0 %v526
  %v858 = vpop.f32.mrf.mxu0
  %v859 = vadd.f32 %v690, %v858
  %v860 = vpop.f32.mrf.mxu0
  %v861 = vadd.f32 %v692, %v860
  %862 = vmatmul.bf16.gmra.mxu0 %v529
  %v863 = vpop.f32.mrf.mxu0
  %v864 = vadd.f32 %v695, %v863
  %v865 = vpop.f32.mrf.mxu0
  %v866 = vadd.f32 %v697, %v865
  %867 = vmatmul.bf16.gmra.mxu0 %v532
  %v868 = vpop.f32.mrf.mxu0
  %v869 = vadd.f32 %v700, %v868
  %v870 = vpop.f32.mrf.mxu0
  %v871 = vadd.f32 %v702, %v870
  %872 = vmatmul.bf16.gmra.mxu0 %v535
  %v873 = vpop.f32.mrf.mxu0
  %v874 = vadd.f32 %v705, %v873
  %v875 = vpop.f32.mrf.mxu0
  %v876 = vadd.f32 %v707, %v875
  %877 = vmatmul.bf16.gmra.mxu0 %v538
  %v878 = vpop.f32.mrf.mxu0
  %v879 = vadd.f32 %v710, %v878
  %v880 = vpop.f32.mrf.mxu0
  %v881 = vadd.f32 %v712, %v880
  %882 = vmatmul.bf16.gmra.mxu0 %v541
  %v883 = vpop.f32.mrf.mxu0
  %v884 = vadd.f32 %v715, %v883
  %v885 = vpop.f32.mrf.mxu0
  %v886 = vadd.f32 %v717, %v885
  %887 = vdwg.mxu0
  %v888 = vld [vmem:[%s2] sm:$0x1]
  %v890 = vperm.slane %v888, 0
  %v892 = vmul.f32 %v729, %v890
  %v893 = vmul.f32 %v731, %v890
  %v894 = vmul.f32 %v734, %v890
  %v895 = vmul.f32 %v736, %v890
  %v896 = vmul.f32 %v739, %v890
  %v897 = vmul.f32 %v741, %v890
  %v898 = vmul.f32 %v744, %v890
  %v899 = vmul.f32 %v746, %v890
  %v900 = vmul.f32 %v749, %v890
  %v901 = vmul.f32 %v751, %v890
  %v902 = vmul.f32 %v754, %v890
  %v903 = vmul.f32 %v756, %v890
  %v904 = vmul.f32 %v759, %v890
  %v905 = vmul.f32 %v761, %v890
  %v906 = vmul.f32 %v764, %v890
  %v907 = vmul.f32 %v766, %v890
  %v908 = vmul.f32 %v769, %v890
  %v909 = vmul.f32 %v771, %v890
  %v910 = vmul.f32 %v774, %v890
  %v911 = vmul.f32 %v776, %v890
  %v912 = vmul.f32 %v779, %v890
  %v913 = vmul.f32 %v781, %v890
  %v914 = vmul.f32 %v784, %v890
  %v915 = vmul.f32 %v786, %v890
  %v916 = vmul.f32 %v789, %v890
  %v917 = vmul.f32 %v791, %v890
  %v918 = vmul.f32 %v794, %v890
  %v919 = vmul.f32 %v796, %v890
  %v920 = vmul.f32 %v799, %v890
  %v921 = vmul.f32 %v801, %v890
  %v922 = vmul.f32 %v804, %v890
  %v923 = vmul.f32 %v806, %v890
  %v924 = vmul.f32 %v809, %v890
  %v925 = vmul.f32 %v811, %v890
  %v926 = vmul.f32 %v814, %v890
  %v927 = vmul.f32 %v816, %v890
  %v928 = vmul.f32 %v819, %v890
  %v929 = vmul.f32 %v821, %v890
  %v930 = vmul.f32 %v824, %v890
  %v931 = vmul.f32 %v826, %v890
  %v932 = vmul.f32 %v829, %v890
  %v933 = vmul.f32 %v831, %v890
  %v934 = vmul.f32 %v834, %v890
  %v935 = vmul.f32 %v836, %v890
  %v936 = vmul.f32 %v839, %v890
  %v937 = vmul.f32 %v841, %v890
  %v938 = vmul.f32 %v844, %v890
  %v939 = vmul.f32 %v846, %v890
  %v940 = vmul.f32 %v849, %v890
  %v941 = vmul.f32 %v851, %v890
  %v942 = vmul.f32 %v854, %v890
  %v943 = vmul.f32 %v856, %v890
  %v944 = vmul.f32 %v859, %v890
  %v945 = vmul.f32 %v861, %v890
  %v946 = vmul.f32 %v864, %v890
  %v947 = vmul.f32 %v866, %v890
  %v948 = vmul.f32 %v869, %v890
  %v949 = vmul.f32 %v871, %v890
  %v950 = vmul.f32 %v874, %v890
  %v951 = vmul.f32 %v876, %v890
  %v952 = vmul.f32 %v879, %v890
  %v953 = vmul.f32 %v881, %v890
  %v954 = vmul.f32 %v884, %v890
  %v955 = vmul.f32 %v886, %v890
  %v956 = vld [vmem:[%s3] sm:$0x1]
  %v958 = vperm.slane %v956, 0
  %v960 = vadd.f32 %v892, %v958
  %v961 = vadd.f32 %v893, %v958
  %v962 = vadd.f32 %v894, %v958
  %v963 = vadd.f32 %v895, %v958
  %v964 = vadd.f32 %v896, %v958
  %v965 = vadd.f32 %v897, %v958
  %v966 = vadd.f32 %v898, %v958
  %v967 = vadd.f32 %v899, %v958
  %v968 = vadd.f32 %v900, %v958
  %v969 = vadd.f32 %v901, %v958
  %v970 = vadd.f32 %v902, %v958
  %v971 = vadd.f32 %v903, %v958
  %v972 = vadd.f32 %v904, %v958
  %v973 = vadd.f32 %v905, %v958
  %v974 = vadd.f32 %v906, %v958
  %v975 = vadd.f32 %v907, %v958
  %v976 = vadd.f32 %v908, %v958
  %v977 = vadd.f32 %v909, %v958
  %v978 = vadd.f32 %v910, %v958
  %v979 = vadd.f32 %v911, %v958
  %v980 = vadd.f32 %v912, %v958
  %v981 = vadd.f32 %v913, %v958
  %v982 = vadd.f32 %v914, %v958
  %v983 = vadd.f32 %v915, %v958
  %v984 = vadd.f32 %v916, %v958
  %v985 = vadd.f32 %v917, %v958
  %v986 = vadd.f32 %v918, %v958
  %v987 = vadd.f32 %v919, %v958
  %v988 = vadd.f32 %v920, %v958
  %v989 = vadd.f32 %v921, %v958
  %v990 = vadd.f32 %v922, %v958
  %v991 = vadd.f32 %v923, %v958
  %v992 = vadd.f32 %v924, %v958
  %v993 = vadd.f32 %v925, %v958
  %v994 = vadd.f32 %v926, %v958
  %v995 = vadd.f32 %v927, %v958
  %v996 = vadd.f32 %v928, %v958
  %v997 = vadd.f32 %v929, %v958
  %v998 = vadd.f32 %v930, %v958
  %v999 = vadd.f32 %v931, %v958
  %v1000 = vadd.f32 %v932, %v958
  %v1001 = vadd.f32 %v933, %v958
  %v1002 = vadd.f32 %v934, %v958
  %v1003 = vadd.f32 %v935, %v958
  %v1004 = vadd.f32 %v936, %v958
  %v1005 = vadd.f32 %v937, %v958
  %v1006 = vadd.f32 %v938, %v958
  %v1007 = vadd.f32 %v939, %v958
  %v1008 = vadd.f32 %v940, %v958
  %v1009 = vadd.f32 %v941, %v958
  %v1010 = vadd.f32 %v942, %v958
  %v1011 = vadd.f32 %v943, %v958
  %v1012 = vadd.f32 %v944, %v958
  %v1013 = vadd.f32 %v945, %v958
  %v1014 = vadd.f32 %v946, %v958
  %v1015 = vadd.f32 %v947, %v958
  %v1016 = vadd.f32 %v948, %v958
  %v1017 = vadd.f32 %v949, %v958
  %v1018 = vadd.f32 %v950, %v958
  %v1019 = vadd.f32 %v951, %v958
  %v1020 = vadd.f32 %v952, %v958
  %v1021 = vadd.f32 %v953, %v958
  %v1022 = vadd.f32 %v954, %v958
  %v1023 = vadd.f32 %v955, %v958
  %v1024 = vmax.f32 %v960, 0.0
  %v1025 = vmax.f32 %v961, 0.0
  %v1026 = vmax.f32 %v962, 0.0
  %v1027 = vmax.f32 %v963, 0.0
  %v1028 = vmax.f32 %v964, 0.0
  %v1029 = vmax.f32 %v965, 0.0
  %v1030 = vmax.f32 %v966, 0.0
  %v1031 = vmax.f32 %v967, 0.0
  %v1032 = vmax.f32 %v968, 0.0
  %v1033 = vmax.f32 %v969, 0.0
  %v1034 = vmax.f32 %v970, 0.0
  %v1035 = vmax.f32 %v971, 0.0
  %v1036 = vmax.f32 %v972, 0.0
  %v1037 = vmax.f32 %v973, 0.0
  %v1038 = vmax.f32 %v974, 0.0
  %v1039 = vmax.f32 %v975, 0.0
  %v1040 = vmax.f32 %v976, 0.0
  %v1041 = vmax.f32 %v977, 0.0
  %v1042 = vmax.f32 %v978, 0.0
  %v1043 = vmax.f32 %v979, 0.0
  %v1044 = vmax.f32 %v980, 0.0
  %v1045 = vmax.f32 %v981, 0.0
  %v1046 = vmax.f32 %v982, 0.0
  %v1047 = vmax.f32 %v983, 0.0
  %v1048 = vmax.f32 %v984, 0.0
  %v1049 = vmax.f32 %v985, 0.0
  %v1050 = vmax.f32 %v986, 0.0
  %v1051 = vmax.f32 %v987, 0.0
  %v1052 = vmax.f32 %v988, 0.0
  %v1053 = vmax.f32 %v989, 0.0
  %v1054 = vmax.f32 %v990, 0.0
  %v1055 = vmax.f32 %v991, 0.0
  %v1056 = vmax.f32 %v992, 0.0
  %v1057 = vmax.f32 %v993, 0.0
  %v1058 = vmax.f32 %v994, 0.0
  %v1059 = vmax.f32 %v995, 0.0
  %v1060 = vmax.f32 %v996, 0.0
  %v1061 = vmax.f32 %v997, 0.0
  %v1062 = vmax.f32 %v998, 0.0
  %v1063 = vmax.f32 %v999, 0.0
  %v1064 = vmax.f32 %v1000, 0.0
  %v1065 = vmax.f32 %v1001, 0.0
  %v1066 = vmax.f32 %v1002, 0.0
  %v1067 = vmax.f32 %v1003, 0.0
  %v1068 = vmax.f32 %v1004, 0.0
  %v1069 = vmax.f32 %v1005, 0.0
  %v1070 = vmax.f32 %v1006, 0.0
  %v1071 = vmax.f32 %v1007, 0.0
  %v1072 = vmax.f32 %v1008, 0.0
  %v1073 = vmax.f32 %v1009, 0.0
  %v1074 = vmax.f32 %v1010, 0.0
  %v1075 = vmax.f32 %v1011, 0.0
  %v1076 = vmax.f32 %v1012, 0.0
  %v1077 = vmax.f32 %v1013, 0.0
  %v1078 = vmax.f32 %v1014, 0.0
  %v1079 = vmax.f32 %v1015, 0.0
  %v1080 = vmax.f32 %v1016, 0.0
  %v1081 = vmax.f32 %v1017, 0.0
  %v1082 = vmax.f32 %v1018, 0.0
  %v1083 = vmax.f32 %v1019, 0.0
  %v1084 = vmax.f32 %v1020, 0.0
  %v1085 = vmax.f32 %v1021, 0.0
  %v1086 = vmax.f32 %v1022, 0.0
  %v1087 = vmax.f32 %v1023, 0.0
  %v1088 = vpack.c.bf16 %v1024, %v1024
  %v1089 = vpack.c.bf16 %v1025, %v1025
  %v1090 = vpack.c.bf16 %v1026, %v1026
  %v1091 = vpack.c.bf16 %v1027, %v1027
  %v1092 = vpack.c.bf16 %v1028, %v1028
  %v1093 = vpack.c.bf16 %v1029, %v1029
  %v1094 = vpack.c.bf16 %v1030, %v1030
  %v1095 = vpack.c.bf16 %v1031, %v1031
  %v1096 = vpack.c.bf16 %v1032, %v1032
  %v1097 = vpack.c.bf16 %v1033, %v1033
  %v1098 = vpack.c.bf16 %v1034, %v1034
  %v1099 = vpack.c.bf16 %v1035, %v1035
  %v1100 = vpack.c.bf16 %v1036, %v1036
  %v1101 = vpack.c.bf16 %v1037, %v1037
  %v1102 = vpack.c.bf16 %v1038, %v1038
  %v1103 = vpack.c.bf16 %v1039, %v1039
  %v1104 = vpack.c.bf16 %v1040, %v1040
  %v1105 = vpack.c.bf16 %v1041, %v1041
  %v1106 = vpack.c.bf16 %v1042, %v1042
  %v1107 = vpack.c.bf16 %v1043, %v1043
  %v1108 = vpack.c.bf16 %v1044, %v1044
  %v1109 = vpack.c.bf16 %v1045, %v1045
  %v1110 = vpack.c.bf16 %v1046, %v1046
  %v1111 = vpack.c.bf16 %v1047, %v1047
  %v1112 = vpack.c.bf16 %v1048, %v1048
  %v1113 = vpack.c.bf16 %v1049, %v1049
  %v1114 = vpack.c.bf16 %v1050, %v1050
  %v1115 = vpack.c.bf16 %v1051, %v1051
  %v1116 = vpack.c.bf16 %v1052, %v1052
  %v1117 = vpack.c.bf16 %v1053, %v1053
  %v1118 = vpack.c.bf16 %v1054, %v1054
  %v1119 = vpack.c.bf16 %v1055, %v1055
  %v1120 = vpack.c.bf16 %v1056, %v1056
  %v1121 = vpack.c.bf16 %v1057, %v1057
  %v1122 = vpack.c.bf16 %v1058, %v1058
  %v1123 = vpack.c.bf16 %v1059, %v1059
  %v1124 = vpack.c.bf16 %v1060, %v1060
  %v1125 = vpack.c.bf16 %v1061, %v1061
  %v1126 = vpack.c.bf16 %v1062, %v1062
  %v1127 = vpack.c.bf16 %v1063, %v1063
  %v1128 = vpack.c.bf16 %v1064, %v1064
  %v1129 = vpack.c.bf16 %v1065, %v1065
  %v1130 = vpack.c.bf16 %v1066, %v1066
  %v1131 = vpack.c.bf16 %v1067, %v1067
  %v1132 = vpack.c.bf16 %v1068, %v1068
  %v1133 = vpack.c.bf16 %v1069, %v1069
  %v1134 = vpack.c.bf16 %v1070, %v1070
  %v1135 = vpack.c.bf16 %v1071, %v1071
  %v1136 = vpack.c.bf16 %v1072, %v1072
  %v1137 = vpack.c.bf16 %v1073, %v1073
  %v1138 = vpack.c.bf16 %v1074, %v1074
  %v1139 = vpack.c.bf16 %v1075, %v1075
  %v1140 = vpack.c.bf16 %v1076, %v1076
  %v1141 = vpack.c.bf16 %v1077, %v1077
  %v1142 = vpack.c.bf16 %v1078, %v1078
  %v1143 = vpack.c.bf16 %v1079, %v1079
  %v1144 = vpack.c.bf16 %v1080, %v1080
  %v1145 = vpack.c.bf16 %v1081, %v1081
  %v1146 = vpack.c.bf16 %v1082, %v1082
  %v1147 = vpack.c.bf16 %v1083, %v1083
  %v1148 = vpack.c.bf16 %v1084, %v1084
  %v1149 = vpack.c.bf16 %v1085, %v1085
  %v1150 = vpack.c.bf16 %v1086, %v1086
  %v1151 = vpack.c.bf16 %v1087, %v1087
  %vm1152 = vcmask 519168
  %1153 = vst.msk [vmem:[%s4] sm:$0xf] %vm1152, %v1088
  %1154 = vst.msk [vmem:[%s4 + $0x4] sm:$0xf] %vm1152, %v1089
  %1155 = vst.msk [vmem:[%s4 + $0x8] sm:$0xf] %vm1152, %v1090
  %1156 = vst.msk [vmem:[%s4 + $0xc] sm:$0xf] %vm1152, %v1091
  %1157 = vst.msk [vmem:[%s4 + $0x10] sm:$0xf] %vm1152, %v1092
  %1158 = vst.msk [vmem:[%s4 + $0x14] sm:$0xf] %vm1152, %v1093
  %1159 = vst.msk [vmem:[%s4 + $0x18] sm:$0xf] %vm1152, %v1094
  %1160 = vst.msk [vmem:[%s4 + $0x1c] sm:$0xf] %vm1152, %v1095
  %1161 = vst.msk [vmem:[%s4 + $0x20] sm:$0xf] %vm1152, %v1096
  %1162 = vst.msk [vmem:[%s4 + $0x24] sm:$0xf] %vm1152, %v1097
  %1163 = vst.msk [vmem:[%s4 + $0x28] sm:$0xf] %vm1152, %v1098
  %1164 = vst.msk [vmem:[%s4 + $0x2c] sm:$0xf] %vm1152, %v1099
  %1165 = vst.msk [vmem:[%s4 + $0x30] sm:$0xf] %vm1152, %v1100
  %1166 = vst.msk [vmem:[%s4 + $0x34] sm:$0xf] %vm1152, %v1101
  %1167 = vst.msk [vmem:[%s4 + $0x38] sm:$0xf] %vm1152, %v1102
  %1168 = vst.msk [vmem:[%s4 + $0x3c] sm:$0xf] %vm1152, %v1103
  %1169 = vst.msk [vmem:[%s4 + $0x40] sm:$0xf] %vm1152, %v1104
  %1170 = vst.msk [vmem:[%s4 + $0x44] sm:$0xf] %vm1152, %v1105
  %1171 = vst.msk [vmem:[%s4 + $0x48] sm:$0xf] %vm1152, %v1106
  %1172 = vst.msk [vmem:[%s4 + $0x4c] sm:$0xf] %vm1152, %v1107
  %1173 = vst.msk [vmem:[%s4 + $0x50] sm:$0xf] %vm1152, %v1108
  %1174 = vst.msk [vmem:[%s4 + $0x54] sm:$0xf] %vm1152, %v1109
  %1175 = vst.msk [vmem:[%s4 + $0x58] sm:$0xf] %vm1152, %v1110
  %1176 = vst.msk [vmem:[%s4 + $0x5c] sm:$0xf] %vm1152, %v1111
  %1177 = vst.msk [vmem:[%s4 + $0x60] sm:$0xf] %vm1152, %v1112
  %1178 = vst.msk [vmem:[%s4 + $0x64] sm:$0xf] %vm1152, %v1113
  %1179 = vst.msk [vmem:[%s4 + $0x68] sm:$0xf] %vm1152, %v1114
  %1180 = vst.msk [vmem:[%s4 + $0x6c] sm:$0xf] %vm1152, %v1115
  %1181 = vst.msk [vmem:[%s4 + $0x70] sm:$0xf] %vm1152, %v1116
  %1182 = vst.msk [vmem:[%s4 + $0x74] sm:$0xf] %vm1152, %v1117
  %1183 = vst.msk [vmem:[%s4 + $0x78] sm:$0xf] %vm1152, %v1118
  %1184 = vst.msk [vmem:[%s4 + $0x7c] sm:$0xf] %vm1152, %v1119
  %1185 = vst.msk [vmem:[%s4 + $0x80] sm:$0xf] %vm1152, %v1120
  %1186 = vst.msk [vmem:[%s4 + $0x84] sm:$0xf] %vm1152, %v1121
  %1187 = vst.msk [vmem:[%s4 + $0x88] sm:$0xf] %vm1152, %v1122
  %1188 = vst.msk [vmem:[%s4 + $0x8c] sm:$0xf] %vm1152, %v1123
  %1189 = vst.msk [vmem:[%s4 + $0x90] sm:$0xf] %vm1152, %v1124
  %1190 = vst.msk [vmem:[%s4 + $0x94] sm:$0xf] %vm1152, %v1125
  %1191 = vst.msk [vmem:[%s4 + $0x98] sm:$0xf] %vm1152, %v1126
  %1192 = vst.msk [vmem:[%s4 + $0x9c] sm:$0xf] %vm1152, %v1127
  %1193 = vst.msk [vmem:[%s4 + $0xa0] sm:$0xf] %vm1152, %v1128
  %1194 = vst.msk [vmem:[%s4 + $0xa4] sm:$0xf] %vm1152, %v1129
  %1195 = vst.msk [vmem:[%s4 + $0xa8] sm:$0xf] %vm1152, %v1130
  %1196 = vst.msk [vmem:[%s4 + $0xac] sm:$0xf] %vm1152, %v1131
  %1197 = vst.msk [vmem:[%s4 + $0xb0] sm:$0xf] %vm1152, %v1132
  %1198 = vst.msk [vmem:[%s4 + $0xb4] sm:$0xf] %vm1152, %v1133
  %1199 = vst.msk [vmem:[%s4 + $0xb8] sm:$0xf] %vm1152, %v1134
  %1200 = vst.msk [vmem:[%s4 + $0xbc] sm:$0xf] %vm1152, %v1135
  %1201 = vst.msk [vmem:[%s4 + $0xc0] sm:$0xf] %vm1152, %v1136
  %1202 = vst.msk [vmem:[%s4 + $0xc4] sm:$0xf] %vm1152, %v1137
  %1203 = vst.msk [vmem:[%s4 + $0xc8] sm:$0xf] %vm1152, %v1138
  %1204 = vst.msk [vmem:[%s4 + $0xcc] sm:$0xf] %vm1152, %v1139
  %1205 = vst.msk [vmem:[%s4 + $0xd0] sm:$0xf] %vm1152, %v1140
  %1206 = vst.msk [vmem:[%s4 + $0xd4] sm:$0xf] %vm1152, %v1141
  %1207 = vst.msk [vmem:[%s4 + $0xd8] sm:$0xf] %vm1152, %v1142
  %1208 = vst.msk [vmem:[%s4 + $0xdc] sm:$0xf] %vm1152, %v1143
  %1209 = vst.msk [vmem:[%s4 + $0xe0] sm:$0xf] %vm1152, %v1144
  %1210 = vst.msk [vmem:[%s4 + $0xe4] sm:$0xf] %vm1152, %v1145
  %1211 = vst.msk [vmem:[%s4 + $0xe8] sm:$0xf] %vm1152, %v1146
  %1212 = vst.msk [vmem:[%s4 + $0xec] sm:$0xf] %vm1152, %v1147
  %1213 = vst.msk [vmem:[%s4 + $0xf0] sm:$0xf] %vm1152, %v1148
  %1214 = vst.msk [vmem:[%s4 + $0xf4] sm:$0xf] %vm1152, %v1149
  %1215 = vst.msk [vmem:[%s4 + $0xf8] sm:$0xf] %vm1152, %v1150
  %1216 = vst.msk [vmem:[%s4 + $0xfc] sm:$0xf] %vm1152, %v1151
  // Predicated region
  $region18: #{_stem.1} parent=0 // pred_check
    _
  $region19: #{_stem.1} parent=0 // pred_check_branch
    %1218 = sbr.rel (0) target = $region21
  $region20: #{_stem.1} parent=0 // pred_region
    _
  $region21: #{_stem.1} parent=0 // pred_fallthru
    _
  // Predicated region
  $region22: #{_stem.1} parent=0 // pred_check
    _
  $region23: #{_stem.1} parent=0 // pred_check_branch
    %1220 = sbr.rel (0) target = $region25
  $region24: #{_stem.1} parent=0 // pred_region
    _
  $region25: #{_stem.1} parent=0 // pred_fallthru
    _

</llo_original>
